<compile_context>
chip_gen: v6e
topology: v6e:2x2x1
jax: 0.10.0
libtpu: 0.0.40
codegen_flags: <defaults>
</compile_context>

<pallas_src>
import functools
import math

import jax
import jax.numpy as jnp
from jax.experimental import pallas as pl
from jax.experimental.pallas import tpu as pltpu


def _round_up(n, m):
    return ((n + m - 1) // m) * m


# ----------------------------------------------------------------------------
# Fused dynamic-conv kernel: per-batch-block expert aggregation (scratch) +
# one MXU 1x1-conv matmul per sample per L tile.
# ----------------------------------------------------------------------------
def _dynconv_kernel(att_ref, x_ref, w_ref, bagg_ref, o_ref, wagg_ref, *,
                    K, mxu_dtype):
    # att_ref : SMEM (B*K,)          per-sample softmax attention (f32 scalars)
    # x_ref   : VMEM (BB, CIN, TL)   input tile (L on the lane axis)
    # w_ref   : VMEM (K, OUT, CIN)   all K expert 1x1 kernels (grid-resident)
    # bagg_ref: VMEM (BB, OUT, 1)    pre-aggregated bias column (att @ bias)
    # o_ref   : VMEM (BB, OUT, TL)   output tile
    # wagg_ref: VMEM (BB, OUT, CIN)  per-sample aggregated kernel (scratch)
    blk = pl.program_id(0)
    BB = x_ref.shape[0]

    # Aggregate the K expert kernels once per batch block, NOT per L tile.
    @pl.when(pl.program_id(1) == 0)
    def _():
        def agg(i, carry):
            g = blk * BB + i                      # global sample index
            w = att_ref[g * K] * w_ref[0]         # f32 VPU scale-add chain
            for k in range(1, K):                 # K is small & static
                w = w + att_ref[g * K + k] * w_ref[k]
            wagg_ref[i] = w.astype(wagg_ref.dtype)
            return carry

        jax.lax.fori_loop(0, BB, agg, 0, unroll=True)

    # Per L tile: a single MXU matmul per sample (f32 accumulation) + bias.
    def body(i, carry):
        x = x_ref[i]
        if mxu_dtype is not None and x.dtype != mxu_dtype:
            x = x.astype(mxu_dtype)
        y = jnp.dot(wagg_ref[i], x, preferred_element_type=jnp.float32)
        o_ref[i] = (y + bagg_ref[i]).astype(o_ref.dtype)
        return carry

    jax.lax.fori_loop(0, BB, body, 0, unroll=True)


def dynamic_conv_apply(x3, att, weight3, b_agg, *, block_b=8, block_l=512):
    """x3: (B, C_in, L); att: (B, K); weight3: (K, C_out, C_in);
    b_agg: (B, C_out)  ->  (B, C_out, L)."""
    B, CIN, L = x3.shape
    K, OUT, _ = weight3.shape

    # Batch block = largest divisor of B that is <= block_b: amortizes the
    # ~0.35 us per-grid-step overhead without ever padding the batch.
    BB = 1
    for d in range(min(B, block_b), 0, -1):
        if B % d == 0:
            BB = d
            break

    # L tiling: lane-dense multiple-of-128 tiles when L is aligned, a single
    # full-extent block for small unaligned L; padding only as a last resort.
    TLcap = _round_up(block_l, 128)
    if L % 128 == 0:
        TL = min(L, TLcap)
        if L % TL:
            TL = 128                      # 128 always divides a 128-multiple
        Lp = L
    elif L <= TLcap:
        TL = L                            # full-extent last dim is allowed
        Lp = L
    else:
        # TODO(synk): large, non-128-aligned L falls back to a padding copy
        # (one extra HBM pass); an in-kernel masked store on the last L tile
        # would avoid it.
        Lp = _round_up(L, 128)
        TL = 128
        x3 = jnp.pad(x3, ((0, 0), (0, 0), (0, Lp - L)))

    # bf16 MXU operands (f32 accumulation) once the dot is large enough to
    # matter; tiny/demo shapes stay f32 so they match an f32 reference.
    use_bf16 = CIN >= 128 and OUT >= 128 and x3.dtype == jnp.float32
    mxu_dtype = jnp.bfloat16 if use_bf16 else None
    wagg_dtype = jnp.bfloat16 if use_bf16 else jnp.float32

    att_flat = att.astype(jnp.float32).reshape(-1)          # (B*K,) -> SMEM
    bagg3 = b_agg.astype(jnp.float32)[:, :, None]           # (B, OUT, 1)

    grid = (B // BB, Lp // TL)
    kernel = functools.partial(_dynconv_kernel, K=K, mxu_dtype=mxu_dtype)
    y = pl.pallas_call(
        kernel,
        out_shape=jax.ShapeDtypeStruct((B, OUT, Lp), x3.dtype),
        grid_spec=pltpu.PrefetchScalarGridSpec(
            num_scalar_prefetch=0,
            grid=grid,
            in_specs=[
                pl.BlockSpec(memory_space=pltpu.MemorySpace.SMEM),    # att 1-D
                pl.BlockSpec((BB, CIN, TL), lambda b, l: (b, 0, l)),  # x tile
                pl.BlockSpec((K, OUT, CIN), lambda b, l: (0, 0, 0)),  # experts
                pl.BlockSpec((BB, OUT, 1), lambda b, l: (b, 0, 0)),   # bias agg
            ],
            out_specs=pl.BlockSpec((BB, OUT, TL), lambda b, l: (b, 0, l)),
            scratch_shapes=[pltpu.VMEM((BB, OUT, CIN), wagg_dtype)],
        ),
        compiler_params=pltpu.CompilerParams(
            dimension_semantics=("parallel", "arbitrary"),
            vmem_limit_bytes=32 * 1024 * 1024),
    )(att_flat, x3, weight3, bagg3)
    if Lp != L:
        y = y[:, :, :L]
    return y


# ----------------------------------------------------------------------------
# Module wrapper with deterministic parameter init
# ----------------------------------------------------------------------------
class DynamicConvPallas:
    def __init__(self, in_planes, out_planes, cond_planes, kernel_size=1,
                 stride=1, padding=0, dilation=1, groups=1, bias=True,
                 K=4, temperature=30, ratio=4, key=None):
        # TODO(synk): only the kernel_size=1 / stride=1 / padding=0 / groups=1
        # configuration (the one dreamtalk uses on (B, C, L, 1) inputs) is
        # implemented; general spatial-conv hyperparameters are not.
        assert kernel_size == 1 and stride == 1 and padding == 0
        assert dilation == 1 and groups == 1 and bias
        assert cond_planes > ratio
        hidden = cond_planes // ratio
        self.K = K
        self.temperature = float(temperature)

        k1, k2, k3, k4 = jax.random.split(key, 4)
        # Attention convs: kaiming-normal-like (fan_out, relu) init.
        self.att_w1 = jax.random.normal(k1, (hidden, cond_planes), jnp.float32) \
            * math.sqrt(2.0 / hidden)
        self.att_w2 = jax.random.normal(k2, (K, hidden), jnp.float32) \
            * math.sqrt(2.0 / K)
        # Expert conv weights/bias: kaiming-uniform(a=sqrt(5)).
        fan_in = (in_planes // groups) * kernel_size * kernel_size
        bound = 1.0 / math.sqrt(fan_in)
        self.weight = jax.random.uniform(
            k3, (K, out_planes, in_planes // groups, kernel_size, kernel_size),
            jnp.float32, minval=-bound, maxval=bound)
        self.bias = jax.random.uniform(
            k4, (K, out_planes), jnp.float32, minval=-bound, maxval=bound)

    def attention(self, cond):
        """(B, C_style) -> (B, K).  Two micro matmuls + softmax: far below one
        MXU tile, so it stays as plain jnp (fused by XLA) instead of a
        dedicated pallas_call.  Kept in f32 (v5e VPU/EUP have no bf16)."""
        h = jnp.maximum(cond @ self.att_w1.T, 0.0)
        logits = (h @ self.att_w2.T) / self.temperature
        return jax.nn.softmax(logits, axis=-1)

    def __call__(self, x, cond):
        """x: (B, C_in, L, 1) NCHW, cond: (B, C_style) -> (B, C_out, L, 1)."""
        B, CIN, L, W = x.shape
        assert W == 1
        att = self.attention(cond)                  # (B, K)
        b_agg = att @ self.bias                     # (B, C_out) pre-aggregated
        w3 = self.weight[:, :, :, 0, 0]             # (K, C_out, C_in)
        y = dynamic_conv_apply(x[..., 0], att, w3, b_agg)   # (B, C_out, L)
        return y[..., None]                         # back to NCHW


if __name__ == "__main__":
    key = jax.random.PRNGKey(0)
    k_mod, k_x, k_c = jax.random.split(key, 3)

    B, CIN, COUT, L, CSTYLE = 2, 4, 8, 16, 32
    mod = DynamicConvPallas(in_planes=CIN, out_planes=COUT, cond_planes=CSTYLE,
                            kernel_size=1, stride=1, K=4, temperature=30,
                            ratio=4, key=k_mod)

    x = jax.random.normal(k_x, (B, CIN, L, 1), jnp.float32)
    cond = jax.random.normal(k_c, (B, CSTYLE), jnp.float32)

    out = jax.block_until_ready(mod(x, cond))
    assert out.shape == (B, COUT, L, 1)

    # Pure-JAX reference of the PyTorch forward semantics.
    att_ref = jax.nn.softmax(
        (jnp.maximum(cond @ mod.att_w1.T, 0.0) @ mod.att_w2.T) / mod.temperature,
        axis=-1)
    w3 = mod.weight[:, :, :, 0, 0]
    W_agg = jnp.einsum('bk,koi->boi', att_ref, w3)
    b_agg_ref = att_ref @ mod.bias
    y_ref = jnp.einsum('boi,bil->bol', W_agg, x[..., 0]) + b_agg_ref[:, :, None]

    if not jnp.allclose(out[..., 0], y_ref, atol=1e-5, rtol=1e-5):
        raise AssertionError("Pallas kernel output mismatch vs reference")
    print("KERNEL_OK")
</pallas_src>

<mosaic_0001>
module attributes {stable_mosaic.version = 11 : i64} {
  func.func @_dynconv_kernel(%arg0: i32, %arg1: i32, %arg2: memref<8xf32, #tpu.memory_space<smem>>, %arg3: memref<2x4x16xf32, #tpu.memory_space<vmem>>, %arg4: memref<4x8x4xf32, #tpu.memory_space<vmem>>, %arg5: memref<2x8x1xf32, #tpu.memory_space<vmem>>, %arg6: memref<2x8x16xf32, #tpu.memory_space<vmem>>, %arg7: memref<2x8x4xf32, #tpu.memory_space<vmem>>) attributes {dimension_semantics = [#tpu.dimension_semantics<parallel>, #tpu.dimension_semantics<arbitrary>], iteration_bounds = array<i64: 1, 1>, scalar_prefetch = 0 : i64, scratch_operands = 1 : i64, tpu.core_type = #tpu.core_type<tc>, window_params = [{transform_indices = @transform_0, window_bounds = array<i64: 8>}, {transform_indices = @transform_1, window_bounds = array<i64: 2, 4, 16>}, {pipeline_mode = #tpu.pipeline_mode<synchronous>, transform_indices = @transform_2, window_bounds = array<i64: 4, 8, 4>}, {transform_indices = @transform_3, window_bounds = array<i64: 2, 8, 1>}, {transform_indices = @transform_4, window_bounds = array<i64: 2, 8, 16>}]} {
    %c0_i32 = arith.constant 0 : i32
    %0 = arith.cmpi eq, %arg1, %c0_i32 : i32
    %1 = arith.extui %0 : i1 to i32
    %c0_i32_0 = arith.constant 0 : i32
    %2 = arith.cmpi ne, %1, %c0_i32_0 : i32
    scf.if %2 {
      %c0_i32_18 = arith.constant 0 : i32
      %c2_i32_19 = arith.constant 2 : i32
      %35 = arith.muli %arg0, %c2_i32_19 : i32
      %36 = arith.addi %35, %c0_i32_18 : i32
      %c4_i32 = arith.constant 4 : i32
      %37 = arith.muli %36, %c4_i32 : i32
      %38 = arith.index_cast %37 : i32 to index
      %39 = memref.load %arg2[%38] : memref<8xf32, #tpu.memory_space<smem>>
      %c0_20 = arith.constant 0 : index
      %c0_21 = arith.constant 0 : index
      %c0_22 = arith.constant 0 : index
      %40 = vector.load %arg4[%c0_20, %c0_21, %c0_22] : memref<4x8x4xf32, #tpu.memory_space<vmem>>, vector<1x8x4xf32>
      %41 = vector.shape_cast %40 : vector<1x8x4xf32> to vector<8x4xf32>
      %42 = vector.broadcast %39 : f32 to vector<8x4xf32>
      %43 = arith.mulf %42, %41 : vector<8x4xf32>
      %c4_i32_23 = arith.constant 4 : i32
      %44 = arith.muli %36, %c4_i32_23 : i32
      %c1_i32_24 = arith.constant 1 : i32
      %45 = arith.addi %44, %c1_i32_24 : i32
      %46 = arith.index_cast %45 : i32 to index
      %47 = memref.load %arg2[%46] : memref<8xf32, #tpu.memory_space<smem>>
      %c1 = arith.constant 1 : index
      %c0_25 = arith.constant 0 : index
      %c0_26 = arith.constant 0 : index
      %48 = vector.load %arg4[%c1, %c0_25, %c0_26] : memref<4x8x4xf32, #tpu.memory_space<vmem>>, vector<1x8x4xf32>
      %49 = vector.shape_cast %48 : vector<1x8x4xf32> to vector<8x4xf32>
      %50 = vector.broadcast %47 : f32 to vector<8x4xf32>
      %51 = arith.mulf %50, %49 : vector<8x4xf32>
      %52 = arith.addf %43, %51 : vector<8x4xf32>
      %c4_i32_27 = arith.constant 4 : i32
      %53 = arith.muli %36, %c4_i32_27 : i32
      %c2_i32_28 = arith.constant 2 : i32
      %54 = arith.addi %53, %c2_i32_28 : i32
      %55 = arith.index_cast %54 : i32 to index
      %56 = memref.load %arg2[%55] : memref<8xf32, #tpu.memory_space<smem>>
      %c2 = arith.constant 2 : index
      %c0_29 = arith.constant 0 : index
      %c0_30 = arith.constant 0 : index
      %57 = vector.load %arg4[%c2, %c0_29, %c0_30] : memref<4x8x4xf32, #tpu.memory_space<vmem>>, vector<1x8x4xf32>
      %58 = vector.shape_cast %57 : vector<1x8x4xf32> to vector<8x4xf32>
      %59 = vector.broadcast %56 : f32 to vector<8x4xf32>
      %60 = arith.mulf %59, %58 : vector<8x4xf32>
      %61 = arith.addf %52, %60 : vector<8x4xf32>
      %c4_i32_31 = arith.constant 4 : i32
      %62 = arith.muli %36, %c4_i32_31 : i32
      %c3_i32 = arith.constant 3 : i32
      %63 = arith.addi %62, %c3_i32 : i32
      %64 = arith.index_cast %63 : i32 to index
      %65 = memref.load %arg2[%64] : memref<8xf32, #tpu.memory_space<smem>>
      %c3 = arith.constant 3 : index
      %c0_32 = arith.constant 0 : index
      %c0_33 = arith.constant 0 : index
      %66 = vector.load %arg4[%c3, %c0_32, %c0_33] : memref<4x8x4xf32, #tpu.memory_space<vmem>>, vector<1x8x4xf32>
      %67 = vector.shape_cast %66 : vector<1x8x4xf32> to vector<8x4xf32>
      %68 = vector.broadcast %65 : f32 to vector<8x4xf32>
      %69 = arith.mulf %68, %67 : vector<8x4xf32>
      %70 = arith.addf %61, %69 : vector<8x4xf32>
      %71 = arith.index_cast %c0_i32_18 : i32 to index
      %c0_34 = arith.constant 0 : index
      %c0_35 = arith.constant 0 : index
      %72 = vector.load %arg7[%71, %c0_34, %c0_35] : memref<2x8x4xf32, #tpu.memory_space<vmem>>, vector<1x8x4xf32>
      %73 = vector.shape_cast %72 : vector<1x8x4xf32> to vector<8x4xf32>
      %74 = vector.shape_cast %70 : vector<8x4xf32> to vector<1x8x4xf32>
      tpu.vector_store %arg7[%71, %c0_34, %c0_35], %74 {strides = array<i32>} : memref<2x8x4xf32, #tpu.memory_space<vmem>>, vector<1x8x4xf32>,
      %c1_i32_36 = arith.constant 1 : i32
      %c2_i32_37 = arith.constant 2 : i32
      %75 = arith.muli %arg0, %c2_i32_37 : i32
      %76 = arith.addi %75, %c1_i32_36 : i32
      %c4_i32_38 = arith.constant 4 : i32
      %77 = arith.muli %76, %c4_i32_38 : i32
      %78 = arith.index_cast %77 : i32 to index
      %79 = memref.load %arg2[%78] : memref<8xf32, #tpu.memory_space<smem>>
      %c0_39 = arith.constant 0 : index
      %c0_40 = arith.constant 0 : index
      %c0_41 = arith.constant 0 : index
      %80 = vector.load %arg4[%c0_39, %c0_40, %c0_41] : memref<4x8x4xf32, #tpu.memory_space<vmem>>, vector<1x8x4xf32>
      %81 = vector.shape_cast %80 : vector<1x8x4xf32> to vector<8x4xf32>
      %82 = vector.broadcast %79 : f32 to vector<8x4xf32>
      %83 = arith.mulf %82, %81 : vector<8x4xf32>
      %c4_i32_42 = arith.constant 4 : i32
      %84 = arith.muli %76, %c4_i32_42 : i32
      %c1_i32_43 = arith.constant 1 : i32
      %85 = arith.addi %84, %c1_i32_43 : i32
      %86 = arith.index_cast %85 : i32 to index
      %87 = memref.load %arg2[%86] : memref<8xf32, #tpu.memory_space<smem>>
      %c1_44 = arith.constant 1 : index
      %c0_45 = arith.constant 0 : index
      %c0_46 = arith.constant 0 : index
      %88 = vector.load %arg4[%c1_44, %c0_45, %c0_46] : memref<4x8x4xf32, #tpu.memory_space<vmem>>, vector<1x8x4xf32>
      %89 = vector.shape_cast %88 : vector<1x8x4xf32> to vector<8x4xf32>
      %90 = vector.broadcast %87 : f32 to vector<8x4xf32>
      %91 = arith.mulf %90, %89 : vector<8x4xf32>
      %92 = arith.addf %83, %91 : vector<8x4xf32>
      %c4_i32_47 = arith.constant 4 : i32
      %93 = arith.muli %76, %c4_i32_47 : i32
      %c2_i32_48 = arith.constant 2 : i32
      %94 = arith.addi %93, %c2_i32_48 : i32
      %95 = arith.index_cast %94 : i32 to index
      %96 = memref.load %arg2[%95] : memref<8xf32, #tpu.memory_space<smem>>
      %c2_49 = arith.constant 2 : index
      %c0_50 = arith.constant 0 : index
      %c0_51 = arith.constant 0 : index
      %97 = vector.load %arg4[%c2_49, %c0_50, %c0_51] : memref<4x8x4xf32, #tpu.memory_space<vmem>>, vector<1x8x4xf32>
      %98 = vector.shape_cast %97 : vector<1x8x4xf32> to vector<8x4xf32>
      %99 = vector.broadcast %96 : f32 to vector<8x4xf32>
      %100 = arith.mulf %99, %98 : vector<8x4xf32>
      %101 = arith.addf %92, %100 : vector<8x4xf32>
      %c4_i32_52 = arith.constant 4 : i32
      %102 = arith.muli %76, %c4_i32_52 : i32
      %c3_i32_53 = arith.constant 3 : i32
      %103 = arith.addi %102, %c3_i32_53 : i32
      %104 = arith.index_cast %103 : i32 to index
      %105 = memref.load %arg2[%104] : memref<8xf32, #tpu.memory_space<smem>>
      %c3_54 = arith.constant 3 : index
      %c0_55 = arith.constant 0 : index
      %c0_56 = arith.constant 0 : index
      %106 = vector.load %arg4[%c3_54, %c0_55, %c0_56] : memref<4x8x4xf32, #tpu.memory_space<vmem>>, vector<1x8x4xf32>
      %107 = vector.shape_cast %106 : vector<1x8x4xf32> to vector<8x4xf32>
      %108 = vector.broadcast %105 : f32 to vector<8x4xf32>
      %109 = arith.mulf %108, %107 : vector<8x4xf32>
      %110 = arith.addf %101, %109 : vector<8x4xf32>
      %111 = arith.index_cast %c1_i32_36 : i32 to index
      %c0_57 = arith.constant 0 : index
      %c0_58 = arith.constant 0 : index
      %112 = vector.load %arg7[%111, %c0_57, %c0_58] : memref<2x8x4xf32, #tpu.memory_space<vmem>>, vector<1x8x4xf32>
      %113 = vector.shape_cast %112 : vector<1x8x4xf32> to vector<8x4xf32>
      %114 = vector.shape_cast %110 : vector<8x4xf32> to vector<1x8x4xf32>
      tpu.vector_store %arg7[%111, %c0_57, %c0_58], %114 {strides = array<i32>} : memref<2x8x4xf32, #tpu.memory_space<vmem>>, vector<1x8x4xf32>,
      %c2_i32_59 = arith.constant 2 : i32
    } else {
    }
    %c0_i32_1 = arith.constant 0 : i32
    %3 = arith.index_cast %c0_i32_1 : i32 to index
    %c0 = arith.constant 0 : index
    %c0_2 = arith.constant 0 : index
    %4 = vector.load %arg3[%3, %c0, %c0_2] : memref<2x4x16xf32, #tpu.memory_space<vmem>>, vector<1x4x16xf32>
    %5 = vector.shape_cast %4 : vector<1x4x16xf32> to vector<4x16xf32>
    %6 = arith.index_cast %c0_i32_1 : i32 to index
    %c0_3 = arith.constant 0 : index
    %c0_4 = arith.constant 0 : index
    %7 = vector.load %arg7[%6, %c0_3, %c0_4] : memref<2x8x4xf32, #tpu.memory_space<vmem>>, vector<1x8x4xf32>
    %8 = vector.shape_cast %7 : vector<1x8x4xf32> to vector<8x4xf32>
    %cst = arith.constant dense<0.000000e+00> : vector<8x16xf32>
    %9 = tpu.matmul %8, %5, %cst {dimension_numbers = #tpu.dot_dimension_numbers<[1], [0], [0], [1], [0, 0, 1, 1], [], []>} : vector<8x4xf32>, vector<4x16xf32>, vector<8x16xf32> -> vector<8x16xf32>
    %10 = arith.index_cast %c0_i32_1 : i32 to index
    %c0_5 = arith.constant 0 : index
    %c0_6 = arith.constant 0 : index
    %11 = vector.load %arg5[%10, %c0_5, %c0_6] : memref<2x8x1xf32, #tpu.memory_space<vmem>>, vector<1x8x1xf32>
    %12 = vector.shape_cast %11 : vector<1x8x1xf32> to vector<8x1xf32>
    %13 = vector.broadcast %12 : vector<8x1xf32> to vector<8x16xf32>
    %14 = arith.addf %9, %13 : vector<8x16xf32>
    %15 = arith.index_cast %c0_i32_1 : i32 to index
    %c0_7 = arith.constant 0 : index
    %c0_8 = arith.constant 0 : index
    %16 = vector.load %arg6[%15, %c0_7, %c0_8] : memref<2x8x16xf32, #tpu.memory_space<vmem>>, vector<1x8x16xf32>
    %17 = vector.shape_cast %16 : vector<1x8x16xf32> to vector<8x16xf32>
    %18 = vector.shape_cast %14 : vector<8x16xf32> to vector<1x8x16xf32>
    tpu.vector_store %arg6[%15, %c0_7, %c0_8], %18 {strides = array<i32>} : memref<2x8x16xf32, #tpu.memory_space<vmem>>, vector<1x8x16xf32>,
    %c1_i32 = arith.constant 1 : i32
    %19 = arith.index_cast %c1_i32 : i32 to index
    %c0_9 = arith.constant 0 : index
    %c0_10 = arith.constant 0 : index
    %20 = vector.load %arg3[%19, %c0_9, %c0_10] : memref<2x4x16xf32, #tpu.memory_space<vmem>>, vector<1x4x16xf32>
    %21 = vector.shape_cast %20 : vector<1x4x16xf32> to vector<4x16xf32>
    %22 = arith.index_cast %c1_i32 : i32 to index
    %c0_11 = arith.constant 0 : index
    %c0_12 = arith.constant 0 : index
    %23 = vector.load %arg7[%22, %c0_11, %c0_12] : memref<2x8x4xf32, #tpu.memory_space<vmem>>, vector<1x8x4xf32>
    %24 = vector.shape_cast %23 : vector<1x8x4xf32> to vector<8x4xf32>
    %cst_13 = arith.constant dense<0.000000e+00> : vector<8x16xf32>
    %25 = tpu.matmul %24, %21, %cst_13 {dimension_numbers = #tpu.dot_dimension_numbers<[1], [0], [0], [1], [0, 0, 1, 1], [], []>} : vector<8x4xf32>, vector<4x16xf32>, vector<8x16xf32> -> vector<8x16xf32>
    %26 = arith.index_cast %c1_i32 : i32 to index
    %c0_14 = arith.constant 0 : index
    %c0_15 = arith.constant 0 : index
    %27 = vector.load %arg5[%26, %c0_14, %c0_15] : memref<2x8x1xf32, #tpu.memory_space<vmem>>, vector<1x8x1xf32>
    %28 = vector.shape_cast %27 : vector<1x8x1xf32> to vector<8x1xf32>
    %29 = vector.broadcast %28 : vector<8x1xf32> to vector<8x16xf32>
    %30 = arith.addf %25, %29 : vector<8x16xf32>
    %31 = arith.index_cast %c1_i32 : i32 to index
    %c0_16 = arith.constant 0 : index
    %c0_17 = arith.constant 0 : index
    %32 = vector.load %arg6[%31, %c0_16, %c0_17] : memref<2x8x16xf32, #tpu.memory_space<vmem>>, vector<1x8x16xf32>
    %33 = vector.shape_cast %32 : vector<1x8x16xf32> to vector<8x16xf32>
    %34 = vector.shape_cast %30 : vector<8x16xf32> to vector<1x8x16xf32>
    tpu.vector_store %arg6[%31, %c0_16, %c0_17], %34 {strides = array<i32>} : memref<2x8x16xf32, #tpu.memory_space<vmem>>, vector<1x8x16xf32>,
    %c2_i32 = arith.constant 2 : i32
    return
  }
  func.func @transform_0(%arg0: i32, %arg1: i32) -> i32 {
    %c0_i32 = arith.constant 0 : i32
    %c0_i32_0 = arith.constant 0 : i32
    return %c0_i32 : i32
  }
  func.func @transform_1(%arg0: i32, %arg1: i32) -> (i32, i32, i32) {
    %c0_i32 = arith.constant 0 : i32
    %c0_i32_0 = arith.constant 0 : i32
    return %arg0, %c0_i32, %arg1 : i32, i32, i32
  }
  func.func @transform_2(%arg0: i32, %arg1: i32) -> (i32, i32, i32) {
    %c0_i32 = arith.constant 0 : i32
    %c0_i32_0 = arith.constant 0 : i32
    %c0_i32_1 = arith.constant 0 : i32
    %c0_i32_2 = arith.constant 0 : i32
    return %c0_i32, %c0_i32_0, %c0_i32_1 : i32, i32, i32
  }
  func.func @transform_3(%arg0: i32, %arg1: i32) -> (i32, i32, i32) {
    %c0_i32 = arith.constant 0 : i32
    %c0_i32_0 = arith.constant 0 : i32
    %c0_i32_1 = arith.constant 0 : i32
    return %arg0, %c0_i32, %c0_i32_0 : i32, i32, i32
  }
  func.func @transform_4(%arg0: i32, %arg1: i32) -> (i32, i32, i32) {
    %c0_i32 = arith.constant 0 : i32
    %c0_i32_0 = arith.constant 0 : i32
    return %arg0, %c0_i32, %arg1 : i32, i32, i32
  }
}

</mosaic_0001>

<llo_original>
// kernel: tpu_custom_call.1
$region0: #{tpu_custom_call.1}
  #allocation0 [shape = 'u32[]', space=smem, size = 0x4, offset = 0x4, fixed_abs, tag = 'smem constant byte address 0x4 - core index']
  #allocation1 [shape = 'u32[144,128]{1,0:T(1,128)}', space=vmem, size = 0x12000, scoped, tag = 'internal scratch']
  #allocation2 [shape = 'f32[2,8,4]{2,1,0:T(8,128)}', space=vmem, size = 0x2000, scoped, tag = 'scratch operand']
  %s0 = inlined_call_operand.vmem [shape: f32[8], index: 0, kind: input, shape index: {}]
  %s1 = inlined_call_operand.vmem [shape: f32[2,4,16], index: 1, kind: input, shape index: {}]
  %s2 = inlined_call_operand.vmem [shape: f32[4,8,4], index: 2, kind: input, shape index: {}]
  %s3 = inlined_call_operand.vmem [shape: f32[2,8,1], index: 3, kind: input, shape index: {}]
  %s4 = inlined_call_operand.hbm [shape: f32[2,8,16], index: 4, kind: output, shape index: {}]
  %s5 = sld [smem:[#allocation0]]
  $region34: #{tpu_custom_call.1} parent=0
    _
  %s7 = ssub.s32 1, %s5
  %s8 = scalar_select 0, %s7, %s5
  $region1: #{tpu_custom_call.1} parent=0
    #allocation3 [shape = 'u8[512]{0}', space=smem, size = 0x200, scoped, tag = 'input window, operand 0, single buffered']
    #allocation4 [shape = 's32[1]{0}', space=sflag, size = 0x4, scoped, tag = 'scoped memory for tpu_custom_call.1']
    #allocation5 [shape = 's32[1]{0}', space=sflag, size = 0x4, scoped, tag = 'scoped memory for tpu_custom_call.1']
    #allocation6 [shape = 'u8[8192]{0}', space=vmem, size = 0x2000, scoped, tag = 'output window, operand 0, single buffered']
    %9 = vsyncpa [#allocation5], 0
    %10 = vsyncpa [#allocation4], 0
    // Predicated region
    $region2: #{tpu_custom_call.1} parent=1 // pred_check
      _
    $region3: #{tpu_custom_call.1} parent=1 // pred_check_branch
      %12 = sbr.rel (0) target = $region5
    $region4: #{tpu_custom_call.1} parent=1 // pred_region
      %s14 = ssub.s32 16, 16
      %15 = vsyncadd [#allocation5], %s14
      %s17 = sshll.u32 %s0, 4
      %s18 = int_to_ptr.vmem [resolvable:$true] %s17
      %20 = dma.vmem_to_smem %s18, 16, [#allocation3], [#allocation5]
    $region5: #{tpu_custom_call.1} parent=1 // pred_fallthru
      _
    // Predicated region
    $region6: #{tpu_custom_call.1} parent=1 // pred_check
      _
    $region7: #{tpu_custom_call.1} parent=1 // pred_check_branch
      %22 = sbr.rel (0) target = $region9
    $region8: #{tpu_custom_call.1} parent=1 // pred_region
      _
    $region9: #{tpu_custom_call.1} parent=1 // pred_fallthru
      _
    // Predicated region
    $region10: #{tpu_custom_call.1} parent=1 // pred_check
      _
    $region11: #{tpu_custom_call.1} parent=1 // pred_check_branch
      %24 = sbr.rel (0) target = $region13
    $region12: #{tpu_custom_call.1} parent=1 // pred_region
      _
    $region13: #{tpu_custom_call.1} parent=1 // pred_fallthru
      _
    // Predicated region
    $region14: #{tpu_custom_call.1} parent=1 // pred_check
      _
    $region15: #{tpu_custom_call.1} parent=1 // pred_check_branch
      %26 = sbr.rel (0) target = $region17
    $region16: #{tpu_custom_call.1} parent=1 // pred_region
      _
    $region17: #{tpu_custom_call.1} parent=1 // pred_fallthru
      _
    // Predicated region
    $region18: #{tpu_custom_call.1} parent=1 // pred_check
      _
    $region19: #{tpu_custom_call.1} parent=1 // pred_check_branch
      %28 = sbr.rel (0) target = $region21
    $region20: #{tpu_custom_call.1} parent=1 // pred_region
      %29 = dma.done [#allocation5], 16
    $region21: #{tpu_custom_call.1} parent=1 // pred_fallthru
      _
    %30 = sfence
    %p31 = scmp.eq.s32.totalorder 0, 0
    // Predicated region
    $region22: #{tpu_custom_call.1} parent=1 // pred_check
      %p32 = pneg %p31
    $region23: #{tpu_custom_call.1} parent=1 // pred_check_branch
      %34 = sbr.rel (%p32) target = $region25
    $region24: #{tpu_custom_call.1} parent=1 // pred_region
      %s35 = smul.u32 0, 8
      %s36 = sld [smem:[#allocation3 + %s35]]
      %v37 = vld [vmem:[%s2] sm:$0xff]
      %v38 = vstv %s36
      %v39 = vmul.f32 %v38, %v37
      %s40 = sadd.s32 %s35, 1
      %s41 = sld [smem:[#allocation3 + %s40]]
      %s42 = scalar_lea.vmem %s2, 8
      %v43 = vld [vmem:[%s42] sm:$0xff]
      %v44 = vstv %s41
      %v45 = vmul.f32 %v44, %v43
      %v46 = vadd.f32 %v39, %v45
      %s47 = sadd.s32 %s35, 2
      %s48 = sld [smem:[#allocation3 + %s47]]
      %s49 = scalar_lea.vmem %s2, 16
      %v50 = vld [vmem:[%s49] sm:$0xff]
      %v51 = vstv %s48
      %v52 = vmul.f32 %v51, %v50
      %v53 = vadd.f32 %v46, %v52
      %s54 = sadd.s32 %s35, 3
      %s55 = sld [smem:[#allocation3 + %s54]]
      %s56 = scalar_lea.vmem %s2, 24
      %v57 = vld [vmem:[%s56] sm:$0xff]
      %v58 = vstv %s55
      %v59 = vmul.f32 %v58, %v57
      %v60 = vadd.f32 %v53, %v59
      %vm61 = vcmask 31744
      %62 = vst.msk [vmem:[#allocation2] sm:$0xff] %vm61, %v60
      %s63 = smul.u32 0, 2
      %s64 = sadd.s32 %s63, 1
      %s65 = smul.u32 %s64, 4
      %s66 = sld [smem:[#allocation3 + %s65]]
      %v67 = vld [vmem:[%s2] sm:$0xff]
      %v68 = vstv %s66
      %v69 = vmul.f32 %v68, %v67
      %s70 = sadd.s32 %s65, 1
      %s71 = sld [smem:[#allocation3 + %s70]]
      %v72 = vld [vmem:[%s42] sm:$0xff]
      %v73 = vstv %s71
      %v74 = vmul.f32 %v73, %v72
      %v75 = vadd.f32 %v69, %v74
      %s76 = sadd.s32 %s65, 2
      %s77 = sld [smem:[#allocation3 + %s76]]
      %v78 = vld [vmem:[%s49] sm:$0xff]
      %v79 = vstv %s77
      %v80 = vmul.f32 %v79, %v78
      %v81 = vadd.f32 %v75, %v80
      %s82 = sadd.s32 %s65, 3
      %s83 = sld [smem:[#allocation3 + %s82]]
      %v84 = vld [vmem:[%s56] sm:$0xff]
      %v85 = vstv %s83
      %v86 = vmul.f32 %v85, %v84
      %v87 = vadd.f32 %v81, %v86
      %s88 = scalar_lea.vmem [#allocation2], 8
      %89 = vst.msk [vmem:[%s88] sm:$0xff] %vm61, %v87
    $region25: #{tpu_custom_call.1} parent=1 // pred_fallthru
      _
    %v90 = vld [vmem:[%s1] sm:$0xf]
    %v91 = vld [vmem:[#allocation2] sm:$0xff]
    %v92 = vld [vmem:[%s3] sm:$0xff]
    %94 = vset.pattern.permute.xlu0 0
    %95 = vperm.xlu0 %94, %v92
    %v96 = vpop.permute.xlu0 %95
    %vm98 = vcmask 31744
    %v100 = vsel %vm98, %v91, 0
    %vm102 = vcmask 1043456
    %v104 = vsel %vm102, %v90, 0
    %106 = vmatprep.subr.mxu0 0.0
    %107 = vmatpush1.msra.mxu0 0.0
    %108 = vmatprep.subr.mxu0 0.0
    %109 = vmatpush1.msra.mxu0 0.0
    %110 = vmatprep.subr.mxu0 0.0
    %111 = vmatpush1.msra.mxu0 0.0
    %112 = vmatprep.subr.mxu0 0.0
    %113 = vmatpush1.msra.mxu0 0.0
    %114 = vmatprep.subr.mxu0 0.0
    %115 = vmatpush1.msra.mxu0 0.0
    %116 = vmatprep.subr.mxu0 0.0
    %117 = vmatpush1.msra.mxu0 0.0
    %118 = vmatprep.subr.mxu0 0.0
    %119 = vmatpush1.msra.mxu0 0.0
    %120 = vmatprep.subr.mxu0 0.0
    %121 = vmatpush1.msra.mxu0 0.0
    %122 = vmatprep.subr.mxu0 0.0
    %123 = vmatpush1.msra.mxu0 0.0
    %124 = vmatprep.subr.mxu0 0.0
    %125 = vmatpush1.msra.mxu0 0.0
    %126 = vmatprep.subr.mxu0 0.0
    %127 = vmatpush1.msra.mxu0 0.0
    %128 = vmatprep.subr.mxu0 0.0
    %129 = vmatpush1.msra.mxu0 0.0
    %130 = vmatprep.subr.mxu0 0.0
    %131 = vmatpush1.msra.mxu0 0.0
    %132 = vmatprep.subr.mxu0 0.0
    %133 = vmatpush1.msra.mxu0 0.0
    %134 = vmatprep.subr.mxu0 0.0
    %135 = vmatpush1.msra.mxu0 0.0
    %136 = vmatprep.subr.mxu0 0.0
    %137 = vmatpush1.msra.mxu0 %v104
    %138 = vmatprep.subr.mxu0 0.0
    %139 = vmatpush2.msra.mxu0 0.0
    %140 = vmatprep.subr.mxu0 0.0
    %141 = vmatpush2.msra.mxu0 0.0
    %142 = vmatprep.subr.mxu0 0.0
    %143 = vmatpush2.msra.mxu0 0.0
    %144 = vmatprep.subr.mxu0 0.0
    %145 = vmatpush2.msra.mxu0 0.0
    %146 = vmatprep.subr.mxu0 0.0
    %147 = vmatpush2.msra.mxu0 0.0
    %148 = vmatprep.subr.mxu0 0.0
    %149 = vmatpush2.msra.mxu0 0.0
    %150 = vmatprep.subr.mxu0 0.0
    %151 = vmatpush2.msra.mxu0 0.0
    %152 = vmatprep.subr.mxu0 0.0
    %153 = vmatpush2.msra.mxu0 0.0
    %154 = vmatprep.subr.mxu0 0.0
    %155 = vmatpush2.msra.mxu0 0.0
    %156 = vmatprep.subr.mxu0 0.0
    %157 = vmatpush2.msra.mxu0 0.0
    %158 = vmatprep.subr.mxu0 0.0
    %159 = vmatpush2.msra.mxu0 0.0
    %160 = vmatprep.subr.mxu0 0.0
    %161 = vmatpush2.msra.mxu0 0.0
    %162 = vmatprep.subr.mxu0 0.0
    %163 = vmatpush2.msra.mxu0 0.0
    %164 = vmatprep.subr.mxu0 0.0
    %165 = vmatpush2.msra.mxu0 0.0
    %166 = vmatprep.subr.mxu0 0.0
    %167 = vmatpush2.msra.mxu0 0.0
    %168 = vmatprep.subr.mxu0 0.0
    %169 = vmatpush2.msra.mxu0 0.0
    %170 = vmatprep.mubr.f32.mxu0 0.0
    %171 = vmatmul.mubr.f32.gmra.mxu0 %v100
    %v172 = vpop.f32.mrf.mxu0
    %v173 = vadd.f32 %v96, %v172
    %v174 = vpop.f32.mrf.mxu0
    %175 = vdwg.mxu0
    %vm176 = vcmask 130048
    %177 = vst.msk [vmem:[#allocation6] sm:$0xff] %vm176, %v173
    %s178 = scalar_lea.vmem %s1, 4
    %v179 = vld [vmem:[%s178] sm:$0xf]
    %s180 = scalar_lea.vmem [#allocation2], 8
    %v181 = vld [vmem:[%s180] sm:$0xff]
    %s182 = scalar_lea.vmem %s3, 8
    %v183 = vld [vmem:[%s182] sm:$0xff]
    %185 = vset.pattern.permute.xlu0 0
    %186 = vperm.xlu0 %185, %v183
    %v187 = vpop.permute.xlu0 %186
    %v190 = vsel %vm98, %v181, 0
    %v193 = vsel %vm102, %v179, 0
    %195 = vmatprep.subr.mxu0 0.0
    %196 = vmatpush1.msra.mxu0 0.0
    %197 = vmatprep.subr.mxu0 0.0
    %198 = vmatpush1.msra.mxu0 0.0
    %199 = vmatprep.subr.mxu0 0.0
    %200 = vmatpush1.msra.mxu0 0.0
    %201 = vmatprep.subr.mxu0 0.0
    %202 = vmatpush1.msra.mxu0 0.0
    %203 = vmatprep.subr.mxu0 0.0
    %204 = vmatpush1.msra.mxu0 0.0
    %205 = vmatprep.subr.mxu0 0.0
    %206 = vmatpush1.msra.mxu0 0.0
    %207 = vmatprep.subr.mxu0 0.0
    %208 = vmatpush1.msra.mxu0 0.0
    %209 = vmatprep.subr.mxu0 0.0
    %210 = vmatpush1.msra.mxu0 0.0
    %211 = vmatprep.subr.mxu0 0.0
    %212 = vmatpush1.msra.mxu0 0.0
    %213 = vmatprep.subr.mxu0 0.0
    %214 = vmatpush1.msra.mxu0 0.0
    %215 = vmatprep.subr.mxu0 0.0
    %216 = vmatpush1.msra.mxu0 0.0
    %217 = vmatprep.subr.mxu0 0.0
    %218 = vmatpush1.msra.mxu0 0.0
    %219 = vmatprep.subr.mxu0 0.0
    %220 = vmatpush1.msra.mxu0 0.0
    %221 = vmatprep.subr.mxu0 0.0
    %222 = vmatpush1.msra.mxu0 0.0
    %223 = vmatprep.subr.mxu0 0.0
    %224 = vmatpush1.msra.mxu0 0.0
    %225 = vmatprep.subr.mxu0 0.0
    %226 = vmatpush1.msra.mxu0 %v193
    %227 = vmatprep.subr.mxu0 0.0
    %228 = vmatpush2.msra.mxu0 0.0
    %229 = vmatprep.subr.mxu0 0.0
    %230 = vmatpush2.msra.mxu0 0.0
    %231 = vmatprep.subr.mxu0 0.0
    %232 = vmatpush2.msra.mxu0 0.0
    %233 = vmatprep.subr.mxu0 0.0
    %234 = vmatpush2.msra.mxu0 0.0
    %235 = vmatprep.subr.mxu0 0.0
    %236 = vmatpush2.msra.mxu0 0.0
    %237 = vmatprep.subr.mxu0 0.0
    %238 = vmatpush2.msra.mxu0 0.0
    %239 = vmatprep.subr.mxu0 0.0
    %240 = vmatpush2.msra.mxu0 0.0
    %241 = vmatprep.subr.mxu0 0.0
    %242 = vmatpush2.msra.mxu0 0.0
    %243 = vmatprep.subr.mxu0 0.0
    %244 = vmatpush2.msra.mxu0 0.0
    %245 = vmatprep.subr.mxu0 0.0
    %246 = vmatpush2.msra.mxu0 0.0
    %247 = vmatprep.subr.mxu0 0.0
    %248 = vmatpush2.msra.mxu0 0.0
    %249 = vmatprep.subr.mxu0 0.0
    %250 = vmatpush2.msra.mxu0 0.0
    %251 = vmatprep.subr.mxu0 0.0
    %252 = vmatpush2.msra.mxu0 0.0
    %253 = vmatprep.subr.mxu0 0.0
    %254 = vmatpush2.msra.mxu0 0.0
    %255 = vmatprep.subr.mxu0 0.0
    %256 = vmatpush2.msra.mxu0 0.0
    %257 = vmatprep.subr.mxu0 0.0
    %258 = vmatpush2.msra.mxu0 0.0
    %259 = vmatprep.mubr.f32.mxu0 0.0
    %260 = vmatmul.mubr.f32.gmra.mxu0 %v190
    %v261 = vpop.f32.mrf.mxu0
    %v262 = vadd.f32 %v187, %v261
    %v263 = vpop.f32.mrf.mxu0
    %264 = vdwg.mxu0
    %s265 = scalar_lea.vmem [#allocation6], 8
    %266 = vst.msk [vmem:[%s265] sm:$0xff] %vm176, %v262
    // Predicated region
    $region26: #{tpu_custom_call.1} parent=1 // pred_check
      _
    $region27: #{tpu_custom_call.1} parent=1 // pred_check_branch
      %268 = sbr.rel (0) target = $region29
    $region28: #{tpu_custom_call.1} parent=1 // pred_region
      %s270 = ssub.s32 256, 256
      %271 = vsyncadd [#allocation4], %s270
      %s272 = sshll.u32 [#allocation6], 4
      %s273 = int_to_ptr.vmem [resolvable:$true] %s272
      %278 = dma.vmem_to_hbm [thread:$0]  %s273, 256, %s4, [#allocation4], 128, 128, 8
    $region29: #{tpu_custom_call.1} parent=1 // pred_fallthru
      _
    // Predicated region
    $region30: #{tpu_custom_call.1} parent=1 // pred_check
      _
    $region31: #{tpu_custom_call.1} parent=1 // pred_check_branch
      %280 = sbr.rel (0) target = $region33
    $region32: #{tpu_custom_call.1} parent=1 // pred_region
      %281 = dma.done [#allocation4], 256
    $region33: #{tpu_custom_call.1} parent=1 // pred_fallthru
      _
    %282 = vsyncpa [#allocation4], 1
    %283 = vsyncpa [#allocation5], 1

</llo_original>
